<compile_context>
chip_gen: v5e
topology: v5e:2x2
jax: 0.10.0
libtpu: 0.0.40
codegen_flags: <defaults>
</compile_context>

<pallas_src>
import numpy as np
import jax
import jax.numpy as jnp
from jax import lax
from jax.experimental import pallas as pl
from jax.experimental.pallas import tpu as pltpu

NEG_SLOPE = 0.01  # PyTorch nn.LeakyReLU default


def _round_up(x, m):
    return ((x + m - 1) // m) * m


def _vmem_capacity_bytes():
    try:
        return int(pltpu.get_tpu_info().vmem_capacity_bytes)
    except Exception:
        pass
    try:
        kind = jax.devices()[0].device_kind.lower()
        if "v5" in kind or "v6" in kind:
            return 128 << 20
    except Exception:
        pass
    return 64 << 20  # conservative (v7x per-TC)


def _default_tn(cout_pad128):
    if cout_pad128 < 256:
        return 128
    try:
        kind = jax.devices()[0].device_kind.lower()
        if "v5" in kind:  # v5e MXU tiles are 128-wide; 256 buys nothing, costs VMEM
            return 128
    except Exception:
        return 128
    return 256  # v6e / v7x: fill the 256-wide MXU N dim


def downsampling_forward(x_nchw, weight, bias, *, compute_dtype=None,
                         target_rows=1024, tn=None, channels_last=False):
    """Conv2d(C->Cout, k=3, s=2, p=1) + LeakyReLU(0.01).

    x_nchw: (N, C, H, W); weight: (Cout, C, 3, 3); bias: (Cout,).
    Returns NCHW (N, Cout, Ho, Wo), or NHWC if channels_last=True (skips the final
    transpose copy for consumers that can take channels-last).
    """
    N, C, H, W = x_nchw.shape
    Cout = weight.shape[0]
    out_dtype = x_nchw.dtype
    if compute_dtype is None:
        # bf16 matmul inputs (f32 accumulate/epilogue): halves HBM + VMEM on this
        # mem-bound op; MXU-native on v5e/v6e/v7x.
        compute_dtype = jnp.bfloat16

    Ho = (H - 1) // 2 + 1
    Wo = (W - 1) // 2 + 1

    # --- channel / lane padding: K4 = 4*Cp multiple of 128; Cout padded to tn ---
    Cp = _round_up(C, 32)
    K4 = 4 * Cp
    if tn is None:
        tn = _default_tn(_round_up(Cout, 128))
    Cout_pad = _round_up(Cout, tn)
    n_co = Cout_pad // tn

    # Block-column count padded to a multiple of 8 so (row, col)->flat reshapes and all
    # in-kernel row slices stay (8,128)-aligned.  Columns >= Wo are ghost outputs.
    Wp8 = _round_up(Wo + 1, 8)

    csz = np.dtype(compute_dtype).itemsize
    osz = np.dtype(out_dtype).itemsize

    def est_vmem(th_, resident_):
        m = th_ * Wp8
        b = 2 * m * K4 * csz                      # main x block (double-buffered)
        b += 2 * Wp8 * K4 * csz                   # 1-row halo block
        w_rows = n_co * 4 if resident_ else 4
        b += 2 * w_rows * K4 * tn * csz           # weight
        b += 2 * tn * 4                           # bias (f32)
        b += 2 * m * tn * osz                     # output block
        b += m * K4 * csz + 8 * m * tn * 4        # in-kernel LHS / f32 temporaries
        return b

    cap = int(0.85 * _vmem_capacity_bytes())

    # --- row-tile selection ---
    th = max(1, min(Ho, pl.cdiv(target_rows, Wp8)))
    if N * n_co == 1 and Ho >= 2:
        th = min(th, pl.cdiv(Ho, 2))   # >= 2 grid steps so both v7x TensorCores get work
    w_resident = est_vmem(1, True) <= cap   # does the whole weight fit (worst case tile)?
    while est_vmem(th, w_resident) > cap and th > 1:
        th = pl.cdiv(th, 2)

    n_ht = pl.cdiv(Ho, th)
    Ho_p = n_ht * th
    M = th * Wp8            # matmul M per grid step (incl. ghost columns)
    M1 = M - Wp8            # rows whose dy=1 taps are still inside the main block
    F = (Ho_p + 1) * Wp8    # flattened (block-row, block-col) extent incl. halo row

    # --- wrapper: pad + space-to-depth repack (single fused XLA copy, ~1x the input).
    #     The 3x3/stride-2 conv becomes a dense 2x2/stride-1 conv over 4C channels
    #     (zero-weight tap slots keep it exact).  No halo gather is materialized.
    Hp = 2 * (Ho_p + 1)
    Wpe = 2 * Wp8
    xpad = jnp.pad(x_nchw.astype(compute_dtype),
                   ((0, 0), (0, Cp - C), (1, Hp - H - 1), (1, Wpe - W - 1)))
    xs = xpad.reshape(N, Cp, Ho_p + 1, 2, Wp8, 2)
    xs = jnp.transpose(xs, (0, 2, 4, 3, 5, 1))      # (N, row, col, p, q, Cp)
    xs = xs.reshape(N, F, K4)                        # flat (row*col) x 4C

    # --- weight: (Cout, C, 3, 3) -> 4 taps (dy, dx), each (K4, Cout_pad), co-chunked ---
    w4 = jnp.pad(weight, ((0, 0), (0, Cp - C), (0, 1), (0, 1)))    # zero kh/kw == 3 taps
    w4 = w4.reshape(Cout, Cp, 2, 2, 2, 2)                           # (co, c, dy, p, dx, q)
    w4 = jnp.transpose(w4, (2, 4, 3, 5, 1, 0)).reshape(4, K4, Cout)
    w4 = jnp.pad(w4, ((0, 0), (0, 0), (0, Cout_pad - Cout)))
    w4 = w4.reshape(4, K4, n_co, tn)
    w4 = jnp.transpose(w4, (2, 0, 1, 3)).reshape(n_co * 4, K4, tn).astype(compute_dtype)
    b_p = jnp.pad(bias, (0, Cout_pad - Cout)).reshape(1, Cout_pad).astype(jnp.float32)

    def kernel(xm_ref, xh_ref, w_ref, b_ref, o_ref):
        wi = 4 * pl.program_id(2) if w_resident else 0
        w00 = w_ref[wi + 0]       # (K4, tn) weight slabs, taps (dy, dx)
        w01 = w_ref[wi + 1]
        w10 = w_ref[wi + 2]
        w11 = w_ref[wi + 3]
        bias_v = b_ref[...]       # (1, tn) f32

        def region(x_a, x_b):
            # x_a feeds the dy=0 taps, x_b the dy=1 taps (same flat rows, next image row).
            acc_a = (jnp.dot(x_a, w00, preferred_element_type=jnp.float32)
                     + jnp.dot(x_b, w10, preferred_element_type=jnp.float32))
            acc_b = (jnp.dot(x_a, w01, preferred_element_type=jnp.float32)
                     + jnp.dot(x_b, w11, preferred_element_type=jnp.float32))
            # dx=1 taps belong to the previous flat row: y[f] = a[f] + b[f+1].
            # The zero-filled last row only ever lands on a ghost column (>= Wo).
            b_shift = jnp.concatenate([acc_b[1:], jnp.zeros_like(acc_b[:1])], axis=0)
            y = acc_a + b_shift + bias_v
            return jnp.where(y >= 0, y, NEG_SLOPE * y).astype(o_ref.dtype)

        if M1 > 0:   # output image-rows [0, th-1): dy=1 rows still inside the main block
            o_ref[0, 0:M1, :] = region(xm_ref[0, 0:M1, :], xm_ref[0, Wp8:M, :])
        # last output image-row of the tile: its dy=1 row is the 1-row halo block
        o_ref[0, M1:M, :] = region(xm_ref[0, M1:M, :], xh_ref[0])

    flops = 8 * N * Ho_p * Wp8 * K4 * Cout_pad
    bytes_accessed = (xs.size * csz + w4.size * csz + b_p.size * 4
                      + N * Ho_p * Wp8 * Cout_pad * osz)
    cost = pl.CostEstimate(flops=int(flops), transcendentals=0,
                           bytes_accessed=int(bytes_accessed))

    vmem_limit = int(min(cap, max(est_vmem(th, w_resident) + (16 << 20), 32 << 20)))

    w_rows_blk = n_co * 4 if w_resident else 4
    if w_resident:
        w_index = lambda b, ht, co: (0, 0, 0)      # fetched once, resident in VMEM
    else:
        w_index = lambda b, ht, co: (co, 0, 0)     # fallback for very large weights

    out = pl.pallas_call(
        kernel,
        out_shape=jax.ShapeDtypeStruct((N, n_ht * M, Cout_pad), out_dtype),
        grid_spec=pltpu.PrefetchScalarGridSpec(
            num_scalar_prefetch=0,
            grid=(N, n_ht, n_co),                  # co innermost: x block reused across co
            in_specs=[
                # main x window: th image-rows of the flattened (row, col) dim
                pl.BlockSpec((1, M, K4), lambda b, ht, co: (b, ht, 0)),
                # 1-row halo: first image-row of the next tile, read straight from the
                # same HBM array (overlapping window, no gathered copy)
                pl.BlockSpec((1, Wp8, K4), lambda b, ht, co: (b, (ht + 1) * th, 0)),
                pl.BlockSpec((w_rows_blk, K4, tn), w_index),
                pl.BlockSpec((1, tn), lambda b, ht, co: (0, co)),
            ],
            out_specs=pl.BlockSpec((1, M, tn), lambda b, ht, co: (b, ht, co)),
        ),
        compiler_params=pltpu.CompilerParams(
            dimension_semantics=("parallel", "parallel", "parallel"),
            vmem_limit_bytes=vmem_limit,
        ),
        cost_estimate=cost,
    )(xs, xs, w4, b_p)

    # Strip ghost rows/columns and channel padding; convert to NCHW for module parity
    # (pass channels_last=True to skip this transpose when the consumer accepts NHWC).
    out = out.reshape(N, Ho_p, Wp8, Cout_pad)[:, :Ho, :Wo, :Cout]
    if channels_last:
        return out
    return jnp.transpose(out, (0, 3, 1, 2))


def _reference(x_nchw, weight, bias):
    y = lax.conv_general_dilated(
        x_nchw, weight, window_strides=(2, 2), padding=((1, 1), (1, 1)),
        dimension_numbers=("NCHW", "OIHW", "NCHW"))
    y = y + bias.reshape(1, -1, 1, 1)
    return jnp.where(y >= 0, y, NEG_SLOPE * y)


if __name__ == "__main__":
    key = jax.random.PRNGKey(0)
    k_x, k_w, k_b = jax.random.split(key, 3)

    N, C, H, W = 2, 4, 16, 16
    x = jax.random.normal(k_x, (N, C, H, W), dtype=jnp.float32)

    fan_in = C * 3 * 3
    bound = 1.0 / (fan_in ** 0.5)
    weight = jax.random.uniform(k_w, (C, C, 3, 3), jnp.float32, -bound, bound)
    bias = jax.random.uniform(k_b, (C,), jnp.float32, -bound, bound)

    ref = _reference(x, weight, bias)

    # Exact path (f32 matmul inputs).
    out = jax.block_until_ready(
        downsampling_forward(x, weight, bias, compute_dtype=jnp.float32))
    assert out.shape == ref.shape == (N, C, H // 2, W // 2)
    assert jnp.allclose(out, ref, atol=1e-5, rtol=1e-5)

    # Default path (bf16 matmul inputs, f32 accumulate) -- loose tolerance.
    out_bf = jax.block_until_ready(downsampling_forward(x, weight, bias))
    assert out_bf.shape == ref.shape
    assert jnp.allclose(out_bf, ref, atol=5e-2, rtol=5e-2)

    # Ragged / multi-tile path: odd spatial size, a row tile that does not divide Ho,
    # and a single-batch grid (exercises the >=2-tile megacore rule and the halo spec).
    x2 = jax.random.normal(k_x, (1, C, 15, 15), dtype=jnp.float32)
    ref2 = _reference(x2, weight, bias)
    out2 = jax.block_until_ready(
        downsampling_forward(x2, weight, bias, compute_dtype=jnp.float32,
                             target_rows=24))
    assert out2.shape == ref2.shape
    assert jnp.allclose(out2, ref2, atol=1e-5, rtol=1e-5)

    print("KERNEL_OK")
</pallas_src>

<mosaic_0001>
module attributes {stable_mosaic.version = 11 : i64} {
  func.func @kernel(%arg0: i32, %arg1: i32, %arg2: i32, %arg3: memref<1x128x128xf32, #tpu.memory_space<vmem>>, %arg4: memref<1x16x128xf32, #tpu.memory_space<vmem>>, %arg5: memref<4x128x128xf32, #tpu.memory_space<vmem>>, %arg6: memref<1x128xf32, #tpu.memory_space<vmem>>, %arg7: memref<1x128x128xf32, #tpu.memory_space<vmem>>) attributes {dimension_semantics = [#tpu.dimension_semantics<parallel>, #tpu.dimension_semantics<parallel>, #tpu.dimension_semantics<parallel>], iteration_bounds = array<i64: 2, 1, 1>, scalar_prefetch = 0 : i64, scratch_operands = 0 : i64, tpu.core_type = #tpu.core_type<tc>, window_params = [{transform_indices = @transform_0, window_bounds = array<i64: 1, 128, 128>}, {transform_indices = @transform_1, window_bounds = array<i64: 1, 16, 128>}, {pipeline_mode = #tpu.pipeline_mode<synchronous>, transform_indices = @transform_2, window_bounds = array<i64: 4, 128, 128>}, {transform_indices = @transform_3, window_bounds = array<i64: 1, 128>}, {transform_indices = @transform_4, window_bounds = array<i64: 1, 128, 128>}]} {
    %c4_i32 = arith.constant 4 : i32
    %0 = arith.muli %c4_i32, %arg2 : i32
    %c0_i32 = arith.constant 0 : i32
    %1 = arith.addi %0, %c0_i32 : i32
    %2 = arith.index_cast %1 : i32 to index
    %c0 = arith.constant 0 : index
    %c0_0 = arith.constant 0 : index
    %3 = vector.load %arg5[%2, %c0, %c0_0] : memref<4x128x128xf32, #tpu.memory_space<vmem>>, vector<1x128x128xf32>
    %4 = vector.shape_cast %3 : vector<1x128x128xf32> to vector<128x128xf32>
    %c1_i32 = arith.constant 1 : i32
    %5 = arith.addi %0, %c1_i32 : i32
    %6 = arith.index_cast %5 : i32 to index
    %c0_1 = arith.constant 0 : index
    %c0_2 = arith.constant 0 : index
    %7 = vector.load %arg5[%6, %c0_1, %c0_2] : memref<4x128x128xf32, #tpu.memory_space<vmem>>, vector<1x128x128xf32>
    %8 = vector.shape_cast %7 : vector<1x128x128xf32> to vector<128x128xf32>
    %c2_i32 = arith.constant 2 : i32
    %9 = arith.addi %0, %c2_i32 : i32
    %10 = arith.index_cast %9 : i32 to index
    %c0_3 = arith.constant 0 : index
    %c0_4 = arith.constant 0 : index
    %11 = vector.load %arg5[%10, %c0_3, %c0_4] : memref<4x128x128xf32, #tpu.memory_space<vmem>>, vector<1x128x128xf32>
    %12 = vector.shape_cast %11 : vector<1x128x128xf32> to vector<128x128xf32>
    %c3_i32 = arith.constant 3 : i32
    %13 = arith.addi %0, %c3_i32 : i32
    %14 = arith.index_cast %13 : i32 to index
    %c0_5 = arith.constant 0 : index
    %c0_6 = arith.constant 0 : index
    %15 = vector.load %arg5[%14, %c0_5, %c0_6] : memref<4x128x128xf32, #tpu.memory_space<vmem>>, vector<1x128x128xf32>
    %16 = vector.shape_cast %15 : vector<1x128x128xf32> to vector<128x128xf32>
    %c0_7 = arith.constant 0 : index
    %c0_8 = arith.constant 0 : index
    %17 = vector.load %arg6[%c0_7, %c0_8] : memref<1x128xf32, #tpu.memory_space<vmem>>, vector<1x128xf32>
    %c0_9 = arith.constant 0 : index
    %c0_10 = arith.constant 0 : index
    %c0_11 = arith.constant 0 : index
    %18 = vector.load %arg3[%c0_9, %c0_10, %c0_11] : memref<1x128x128xf32, #tpu.memory_space<vmem>>, vector<1x112x128xf32>
    %19 = vector.shape_cast %18 : vector<1x112x128xf32> to vector<112x128xf32>
    %c0_12 = arith.constant 0 : index
    %c16 = arith.constant 16 : index
    %c0_13 = arith.constant 0 : index
    %20 = vector.load %arg3[%c0_12, %c16, %c0_13] : memref<1x128x128xf32, #tpu.memory_space<vmem>>, vector<1x112x128xf32>
    %21 = vector.shape_cast %20 : vector<1x112x128xf32> to vector<112x128xf32>
    %cst = arith.constant dense<0.000000e+00> : vector<112x128xf32>
    %22 = tpu.matmul %19, %4, %cst {dimension_numbers = #tpu.dot_dimension_numbers<[1], [0], [0], [1], [0, 0, 1, 1], [], []>} : vector<112x128xf32>, vector<128x128xf32>, vector<112x128xf32> -> vector<112x128xf32>
    %cst_14 = arith.constant dense<0.000000e+00> : vector<112x128xf32>
    %23 = tpu.matmul %21, %12, %cst_14 {dimension_numbers = #tpu.dot_dimension_numbers<[1], [0], [0], [1], [0, 0, 1, 1], [], []>} : vector<112x128xf32>, vector<128x128xf32>, vector<112x128xf32> -> vector<112x128xf32>
    %24 = arith.addf %22, %23 : vector<112x128xf32>
    %cst_15 = arith.constant dense<0.000000e+00> : vector<112x128xf32>
    %25 = tpu.matmul %19, %8, %cst_15 {dimension_numbers = #tpu.dot_dimension_numbers<[1], [0], [0], [1], [0, 0, 1, 1], [], []>} : vector<112x128xf32>, vector<128x128xf32>, vector<112x128xf32> -> vector<112x128xf32>
    %cst_16 = arith.constant dense<0.000000e+00> : vector<112x128xf32>
    %26 = tpu.matmul %21, %16, %cst_16 {dimension_numbers = #tpu.dot_dimension_numbers<[1], [0], [0], [1], [0, 0, 1, 1], [], []>} : vector<112x128xf32>, vector<128x128xf32>, vector<112x128xf32> -> vector<112x128xf32>
    %27 = arith.addf %25, %26 : vector<112x128xf32>
    %28 = vector.extract_strided_slice %27 {offsets = [1, 0], sizes = [111, 128], strides = [1, 1]} : vector<112x128xf32> to vector<111x128xf32>
    %cst_17 = arith.constant 0.000000e+00 : f32
    %29 = vector.broadcast %cst_17 : f32 to vector<1x128xf32>
    %30 = tpu.concatenate %28, %29 in 0 : vector<111x128xf32>, vector<1x128xf32> -> vector<112x128xf32>
    %31 = arith.addf %24, %30 : vector<112x128xf32>
    %32 = vector.broadcast %17 : vector<1x128xf32> to vector<112x128xf32>
    %33 = arith.addf %31, %32 : vector<112x128xf32>
    %cst_18 = arith.constant 0.000000e+00 : f32
    %34 = vector.broadcast %cst_18 : f32 to vector<112x128xf32>
    %35 = arith.cmpf oge, %33, %34 : vector<112x128xf32>
    %cst_19 = arith.constant 0.00999999977 : f32
    %36 = vector.broadcast %cst_19 : f32 to vector<112x128xf32>
    %37 = arith.mulf %36, %33 : vector<112x128xf32>
    %38 = arith.select %35, %33, %37 : vector<112x128xi1>, vector<112x128xf32>
    %c0_20 = arith.constant 0 : index
    %c0_21 = arith.constant 0 : index
    %c0_22 = arith.constant 0 : index
    %39 = vector.load %arg7[%c0_20, %c0_21, %c0_22] : memref<1x128x128xf32, #tpu.memory_space<vmem>>, vector<1x112x128xf32>
    %40 = vector.shape_cast %39 : vector<1x112x128xf32> to vector<112x128xf32>
    %41 = vector.shape_cast %38 : vector<112x128xf32> to vector<1x112x128xf32>
    tpu.vector_store %arg7[%c0_20, %c0_21, %c0_22], %41 {strides = array<i32>} : memref<1x128x128xf32, #tpu.memory_space<vmem>>, vector<1x112x128xf32>,
    %c0_23 = arith.constant 0 : index
    %c112 = arith.constant 112 : index
    %c0_24 = arith.constant 0 : index
    %42 = vector.load %arg3[%c0_23, %c112, %c0_24] : memref<1x128x128xf32, #tpu.memory_space<vmem>>, vector<1x16x128xf32>
    %43 = vector.shape_cast %42 : vector<1x16x128xf32> to vector<16x128xf32>
    %c0_25 = arith.constant 0 : index
    %c0_26 = arith.constant 0 : index
    %c0_27 = arith.constant 0 : index
    %44 = vector.load %arg4[%c0_25, %c0_26, %c0_27] : memref<1x16x128xf32, #tpu.memory_space<vmem>>, vector<1x16x128xf32>
    %45 = vector.shape_cast %44 : vector<1x16x128xf32> to vector<16x128xf32>
    %cst_28 = arith.constant dense<0.000000e+00> : vector<16x128xf32>
    %46 = tpu.matmul %43, %4, %cst_28 {dimension_numbers = #tpu.dot_dimension_numbers<[1], [0], [0], [1], [0, 0, 1, 1], [], []>} : vector<16x128xf32>, vector<128x128xf32>, vector<16x128xf32> -> vector<16x128xf32>
    %cst_29 = arith.constant dense<0.000000e+00> : vector<16x128xf32>
    %47 = tpu.matmul %45, %12, %cst_29 {dimension_numbers = #tpu.dot_dimension_numbers<[1], [0], [0], [1], [0, 0, 1, 1], [], []>} : vector<16x128xf32>, vector<128x128xf32>, vector<16x128xf32> -> vector<16x128xf32>
    %48 = arith.addf %46, %47 : vector<16x128xf32>
    %cst_30 = arith.constant dense<0.000000e+00> : vector<16x128xf32>
    %49 = tpu.matmul %43, %8, %cst_30 {dimension_numbers = #tpu.dot_dimension_numbers<[1], [0], [0], [1], [0, 0, 1, 1], [], []>} : vector<16x128xf32>, vector<128x128xf32>, vector<16x128xf32> -> vector<16x128xf32>
    %cst_31 = arith.constant dense<0.000000e+00> : vector<16x128xf32>
    %50 = tpu.matmul %45, %16, %cst_31 {dimension_numbers = #tpu.dot_dimension_numbers<[1], [0], [0], [1], [0, 0, 1, 1], [], []>} : vector<16x128xf32>, vector<128x128xf32>, vector<16x128xf32> -> vector<16x128xf32>
    %51 = arith.addf %49, %50 : vector<16x128xf32>
    %52 = vector.extract_strided_slice %51 {offsets = [1, 0], sizes = [15, 128], strides = [1, 1]} : vector<16x128xf32> to vector<15x128xf32>
    %cst_32 = arith.constant 0.000000e+00 : f32
    %53 = vector.broadcast %cst_32 : f32 to vector<1x128xf32>
    %54 = tpu.concatenate %52, %53 in 0 : vector<15x128xf32>, vector<1x128xf32> -> vector<16x128xf32>
    %55 = arith.addf %48, %54 : vector<16x128xf32>
    %56 = vector.broadcast %17 : vector<1x128xf32> to vector<16x128xf32>
    %57 = arith.addf %55, %56 : vector<16x128xf32>
    %cst_33 = arith.constant 0.000000e+00 : f32
    %58 = vector.broadcast %cst_33 : f32 to vector<16x128xf32>
    %59 = arith.cmpf oge, %57, %58 : vector<16x128xf32>
    %cst_34 = arith.constant 0.00999999977 : f32
    %60 = vector.broadcast %cst_34 : f32 to vector<16x128xf32>
    %61 = arith.mulf %60, %57 : vector<16x128xf32>
    %62 = arith.select %59, %57, %61 : vector<16x128xi1>, vector<16x128xf32>
    %c0_35 = arith.constant 0 : index
    %c112_36 = arith.constant 112 : index
    %c0_37 = arith.constant 0 : index
    %63 = vector.load %arg7[%c0_35, %c112_36, %c0_37] : memref<1x128x128xf32, #tpu.memory_space<vmem>>, vector<1x16x128xf32>
    %64 = vector.shape_cast %63 : vector<1x16x128xf32> to vector<16x128xf32>
    %65 = vector.shape_cast %62 : vector<16x128xf32> to vector<1x16x128xf32>
    tpu.vector_store %arg7[%c0_35, %c112_36, %c0_37], %65 {strides = array<i32>} : memref<1x128x128xf32, #tpu.memory_space<vmem>>, vector<1x16x128xf32>,
    return
  }
  func.func @transform_0(%arg0: i32, %arg1: i32, %arg2: i32) -> (i32, i32, i32) {
    %c0_i32 = arith.constant 0 : i32
    %c0_i32_0 = arith.constant 0 : i32
    return %arg0, %arg1, %c0_i32 : i32, i32, i32
  }
  func.func @transform_1(%arg0: i32, %arg1: i32, %arg2: i32) -> (i32, i32, i32) {
    %c1_i32 = arith.constant 1 : i32
    %0 = arith.addi %arg1, %c1_i32 : i32
    %c8_i32 = arith.constant 8 : i32
    %1 = arith.muli %0, %c8_i32 : i32
    %c0_i32 = arith.constant 0 : i32
    %c0_i32_0 = arith.constant 0 : i32
    return %arg0, %1, %c0_i32 : i32, i32, i32
  }
  func.func @transform_2(%arg0: i32, %arg1: i32, %arg2: i32) -> (i32, i32, i32) {
    %c0_i32 = arith.constant 0 : i32
    %c0_i32_0 = arith.constant 0 : i32
    %c0_i32_1 = arith.constant 0 : i32
    %c0_i32_2 = arith.constant 0 : i32
    return %c0_i32, %c0_i32_0, %c0_i32_1 : i32, i32, i32
  }
  func.func @transform_3(%arg0: i32, %arg1: i32, %arg2: i32) -> (i32, i32) {
    %c0_i32 = arith.constant 0 : i32
    %c0_i32_0 = arith.constant 0 : i32
    return %c0_i32, %arg2 : i32, i32
  }
  func.func @transform_4(%arg0: i32, %arg1: i32, %arg2: i32) -> (i32, i32, i32) {
    %c0_i32 = arith.constant 0 : i32
    return %arg0, %arg1, %arg2 : i32, i32, i32
  }
}

</mosaic_0001>

<llo_original>
// kernel: tpu_custom_call.1
$region0: #{tpu_custom_call.1}
  #allocation0 [shape = 'u32[]', space=smem, size = 0x4, offset = 0x4, fixed_abs, tag = 'smem constant byte address 0x4 - core index']
  #allocation1 [shape = 'u32[72,128]{1,0:T(1,128)}', space=vmem, size = 0x9000, scoped, tag = 'internal scratch']
  %s0 = inlined_call_operand.hbm [shape: f32[2,144,128], index: 0, kind: input, shape index: {}]
  %s1 = inlined_call_operand.hbm [shape: f32[2,144,128], index: 1, kind: input, shape index: {}]
  %s2 = inlined_call_operand.hbm [shape: f32[4,128,128], index: 2, kind: input, shape index: {}]
  %s3 = inlined_call_operand.vmem [shape: f32[1,128], index: 3, kind: input, shape index: {}]
  %s4 = inlined_call_operand.hbm [shape: f32[2,128,128], index: 4, kind: output, shape index: {}]
  %s5 = sld [smem:[#allocation0]]
  $region61: #{tpu_custom_call.1} parent=0
    _
  %s7 = ssub.s32 1, %s5
  %s8 = scalar_select 0, %s7, %s5
  $region1: #{tpu_custom_call.1} parent=0
    #allocation2 [shape = 'u8[131072]{0}', space=vmem, size = 0x20000, scoped, tag = 'input window, operand 0']
    #allocation3 [shape = 's32[2]{0}', space=sflag, size = 0x8, scoped, tag = 'scoped memory for tpu_custom_call.1']
    #allocation4 [shape = 's32[2]{0}', space=sflag, size = 0x8, scoped, tag = 'scoped memory for tpu_custom_call.1']
    #allocation5 [shape = 'u8[16384]{0}', space=vmem, size = 0x4000, scoped, tag = 'input window, operand 1']
    #allocation6 [shape = 's32[2]{0}', space=sflag, size = 0x8, scoped, tag = 'scoped memory for tpu_custom_call.1']
    #allocation7 [shape = 'u8[262144]{0}', space=vmem, size = 0x40000, scoped, tag = 'input window, operand 2, single buffered']
    #allocation8 [shape = 'u8[131072]{0}', space=vmem, size = 0x20000, scoped, tag = 'output window, operand 0']
    %9 = vsyncpa [#allocation3], 0
    %s10 = scalar_lea.sflag [#allocation3], 1
    %11 = vsyncpa %s10, 0
    %12 = vsyncpa [#allocation6], 0
    %s13 = scalar_lea.sflag [#allocation6], 1
    %14 = vsyncpa %s13, 0
    %15 = vsyncpa [#allocation4], 0
    %s16 = scalar_lea.sflag [#allocation4], 1
    %17 = vsyncpa %s16, 0
    loop: start=0, step=1, limit=4
    $region2: #{tpu_custom_call.1} parent=1 // loop_pre_header
      _
    $region3: #{tpu_custom_call.1} parent=1 // loop_header
      %s19 = sphi 0, %s23
      %p20 = scmp.ge.s32.totalorder %s19, 4
      %s26 = sphi 0, %s45
      %s27 = sphi 0, %s41
      %s28 = sphi 0, %s37
      %s29 = sphi 0, %s26
      %s30 = sphi 0, %s27
      %s31 = sphi 0, %s28
      %s32 = sphi 0, %s29
      %s33 = sphi 0, %s30
      %s34 = sphi 0, %s31
      %s50 = sphi 0, %s52
      %s53 = sphi 0, %s50
      %s54 = sphi 0, %s53
      %s70 = sphi 0, %s54
      %s82 = sphi 0, %s84
      %s85 = sphi 0, %s82
      %s86 = sphi 0, %s85
      %s102 = sphi 0, %s86
      %s106 = sphi 0, %s106
      %s108 = sphi 0, %s106
      %s109 = sphi 0, %s108
      %s123 = sphi 0, %s109
      %s129 = sphi 0, %s131
      %s132 = sphi 0, %s129
      %s133 = sphi 0, %s132
      %s149 = sphi 0, %s133
      %s159 = sphi 0, %s161
      %s162 = sphi 0, %s159
      %s163 = sphi 0, %s162
      %s179 = sphi 0, %s163
    $region4: #{tpu_custom_call.1} parent=1 // loop_header_branch
      %22 = sbr.rel (%p20) target = $region8
    $region5: #{tpu_custom_call.1} parent=1 // loop_body
      %s24 = ssub.s32 %s19, 1
      %s25 = ssub.s32 %s19, 2
      %s35 = sadd.s32 1, %s28
      %p36 = scmp.ge.s32.totalorder %s35, 1
      %s37 = scalar_select %p36, 0, %s35
      %s38 = sadd.s32 1, %s27
      %s39 = scalar_select %p36, %s38, %s27
      %p40 = scmp.ge.s32.totalorder %s39, 1
      %s41 = scalar_select %p40, 0, %s39
      %s42 = sadd.s32 1, %s26
      %s43 = scalar_select %p40, %s42, %s26
      %p44 = scmp.ge.s32.totalorder %s43, 2
      %s45 = scalar_select %p44, 0, %s43
      %s46 = ssub.s32 %s26, %s45
      %s47 = ssub.s32 %s27, %s41
      %s48 = sor.u32 %s46, %s47
      %p49 = scmp.eq.s32.totalorder %s48, 0
      %s51 = sadd.s32 %s50, 1
      %s52 = scalar_select %p49, %s50, %s51
      %p55 = pneg %p49
      %p56 = scmp.eq.s32.totalorder %s19, 1
      %p57 = por %p55, %p56
      %p58 = scmp.ne.s32.totalorder %s50, %s53
      %p59 = scmp.eq.s32.totalorder %s19, 0
      %p60 = por %p58, %p59
      %p61 = scmp.ne.s32.totalorder %s50, %s53
      %p62 = scmp.eq.s32.totalorder %s24, 1
      %p63 = por %p61, %p62
      %p64 = scmp.ne.s32.totalorder %s53, %s54
      %p65 = scmp.eq.s32.totalorder %s24, 0
      %p66 = por %p64, %p65
      %p67 = scmp.ne.s32.totalorder %s53, %s54
      %p68 = scmp.eq.s32.totalorder %s25, 1
      %p69 = por %p67, %p68
      %p71 = scmp.ne.s32.totalorder %s54, %s70
      %p72 = scmp.eq.s32.totalorder %s25, 0
      %p73 = por %p71, %p72
      %s74 = sadd.s32 %s27, 1
      %s75 = smul.u32 %s74, 8
      %s76 = sadd.s32 %s41, 1
      %s77 = smul.u32 %s76, 8
      %s78 = ssub.s32 %s26, %s45
      %s79 = ssub.s32 %s75, %s77
      %s80 = sor.u32 %s78, %s79
      %p81 = scmp.eq.s32.totalorder %s80, 0
      %s83 = sadd.s32 %s82, 1
      %s84 = scalar_select %p81, %s82, %s83
      %p87 = pneg %p81
      %p88 = scmp.eq.s32.totalorder %s19, 1
      %p89 = por %p87, %p88
      %p90 = scmp.ne.s32.totalorder %s82, %s85
      %p91 = scmp.eq.s32.totalorder %s19, 0
      %p92 = por %p90, %p91
      %p93 = scmp.ne.s32.totalorder %s82, %s85
      %p94 = scmp.eq.s32.totalorder %s24, 1
      %p95 = por %p93, %p94
      %p96 = scmp.ne.s32.totalorder %s85, %s86
      %p97 = scmp.eq.s32.totalorder %s24, 0
      %p98 = por %p96, %p97
      %p99 = scmp.ne.s32.totalorder %s85, %s86
      %p100 = scmp.eq.s32.totalorder %s25, 1
      %p101 = por %p99, %p100
      %p103 = scmp.ne.s32.totalorder %s86, %s102
      %p104 = scmp.eq.s32.totalorder %s25, 0
      %p105 = por %p103, %p104
      %s107 = sadd.s32 %s106, 1
      %p110 = scmp.eq.s32.totalorder %s19, 1
      %p111 = scmp.ne.s32.totalorder %s106, %s108
      %p112 = scmp.eq.s32.totalorder %s19, 0
      %p113 = por %p111, %p112
      %p114 = scmp.ne.s32.totalorder %s106, %s108
      %p115 = scmp.eq.s32.totalorder %s24, 1
      %p116 = por %p114, %p115
      %p117 = scmp.ne.s32.totalorder %s108, %s109
      %p118 = scmp.eq.s32.totalorder %s24, 0
      %p119 = por %p117, %p118
      %p120 = scmp.ne.s32.totalorder %s108, %s109
      %p121 = scmp.eq.s32.totalorder %s25, 1
      %p122 = por %p120, %p121
      %p124 = scmp.ne.s32.totalorder %s109, %s123
      %p125 = scmp.eq.s32.totalorder %s25, 0
      %p126 = por %p124, %p125
      %s127 = ssub.s32 %s28, %s37
      %p128 = scmp.eq.s32.totalorder %s127, 0
      %s130 = sadd.s32 %s129, 1
      %s131 = scalar_select %p128, %s129, %s130
      %p134 = pneg %p128
      %p135 = scmp.eq.s32.totalorder %s19, 1
      %p136 = por %p134, %p135
      %p137 = scmp.ne.s32.totalorder %s129, %s132
      %p138 = scmp.eq.s32.totalorder %s19, 0
      %p139 = por %p137, %p138
      %p140 = scmp.ne.s32.totalorder %s129, %s132
      %p141 = scmp.eq.s32.totalorder %s24, 1
      %p142 = por %p140, %p141
      %p143 = scmp.ne.s32.totalorder %s132, %s133
      %p144 = scmp.eq.s32.totalorder %s24, 0
      %p145 = por %p143, %p144
      %p146 = scmp.ne.s32.totalorder %s132, %s133
      %p147 = scmp.eq.s32.totalorder %s25, 1
      %p148 = por %p146, %p147
      %p150 = scmp.ne.s32.totalorder %s133, %s149
      %p151 = scmp.eq.s32.totalorder %s25, 0
      %p152 = por %p150, %p151
      %s153 = ssub.s32 %s26, %s45
      %s154 = ssub.s32 %s27, %s41
      %s155 = sor.u32 %s153, %s154
      %s156 = ssub.s32 %s28, %s37
      %s157 = sor.u32 %s155, %s156
      %p158 = scmp.eq.s32.totalorder %s157, 0
      %s160 = sadd.s32 %s159, 1
      %s161 = scalar_select %p158, %s159, %s160
      %p164 = pneg %p158
      %p165 = scmp.eq.s32.totalorder %s19, 1
      %p166 = por %p164, %p165
      %p167 = scmp.ne.s32.totalorder %s159, %s162
      %p168 = scmp.eq.s32.totalorder %s19, 0
      %p169 = por %p167, %p168
      %p170 = scmp.ne.s32.totalorder %s159, %s162
      %p171 = scmp.eq.s32.totalorder %s24, 1
      %p172 = por %p170, %p171
      %p173 = scmp.ne.s32.totalorder %s162, %s163
      %p174 = scmp.eq.s32.totalorder %s24, 0
      %p175 = por %p173, %p174
      %p176 = scmp.ne.s32.totalorder %s162, %s163
      %p177 = scmp.eq.s32.totalorder %s25, 1
      %p178 = por %p176, %p177
      %p180 = scmp.ne.s32.totalorder %s163, %s179
      %p181 = scmp.eq.s32.totalorder %s25, 0
      %p182 = por %p180, %p181
      %p183 = scmp.le.s32.totalorder 1, %s19
      %p184 = scmp.lt.s32.totalorder %s19, 3
      %p185 = pnand %p183, %p184
      %p186 = pneg %p185
      // Predicated region
      $region9: #{tpu_custom_call.1} parent=5 // pred_check
        _
      $region10: #{tpu_custom_call.1} parent=5 // pred_check_branch
        %188 = sbr.rel (%p185) target = $region12
      $region11: #{tpu_custom_call.1} parent=5 // pred_region
        %s189 = ssub.s32 %s19, 1
        // Predicated region
        $region13: #{tpu_custom_call.1} parent=11 // pred_check
          %p190 = pneg %p119
        $region14: #{tpu_custom_call.1} parent=11 // pred_check_branch
          %192 = sbr.rel (%p190) target = $region16
        $region15: #{tpu_custom_call.1} parent=11 // pred_region
          %194 = vsyncadd [#allocation6], 0
          %s195 = sshll.u32 %s2, 4
          %s196 = int_to_ptr.hbm [resolvable:$true] %s195
          %s197 = sshll.u32 [#allocation7], 4
          %s198 = int_to_ptr.vmem [resolvable:$true] %s197
          %203 = dma.hbm_to_vmem [thread:$0]  %s196, 8192, %s198, [#allocation6], 128, 128, 8
        $region16: #{tpu_custom_call.1} parent=11 // pred_fallthru
          _
        // Predicated region
        $region17: #{tpu_custom_call.1} parent=11 // pred_check
          %p204 = pneg %p145
        $region18: #{tpu_custom_call.1} parent=11 // pred_check_branch
          %206 = sbr.rel (%p204) target = $region20
        $region19: #{tpu_custom_call.1} parent=11 // pred_region
          %p207 = scmp.lt.s32.totalorder %s31, 0
          %s208 = scalar_select %p207, %s31, 0
          %s209 = scalar_lea.vmem %s3, %s208
        $region20: #{tpu_custom_call.1} parent=11 // pred_fallthru
          _
      $region12: #{tpu_custom_call.1} parent=5 // pred_fallthru
        _
      %p210 = scmp.lt.s32.totalorder %s19, 2
      // Predicated region
      $region21: #{tpu_custom_call.1} parent=5 // pred_check
        %p211 = pneg %p210
      $region22: #{tpu_custom_call.1} parent=5 // pred_check_branch
        %213 = sbr.rel (%p211) target = $region24
      $region23: #{tpu_custom_call.1} parent=5 // pred_region
        // Predicated region
        $region25: #{tpu_custom_call.1} parent=23 // pred_check
          %p214 = pneg %p60
        $region26: #{tpu_custom_call.1} parent=23 // pred_check_branch
          %216 = sbr.rel (%p214) target = $region28
        $region27: #{tpu_custom_call.1} parent=23 // pred_region
          %s217 = sand.u32 %s50, 1
          %s218 = scalar_lea.sflag [#allocation3], %s217
          %s219 = sand.u32 %s50, 1
          %s220 = smul.addr %s219, 128
          %s221 = scalar_lea.vmem [#allocation2], %s220
          %s222 = smul.u32 16, %s27
          %s223 = ssub.s32 18, %s222
          %p224 = scmp.lt.s32.totalorder %s223, 16
          %s225 = scalar_select %p224, %s223, 16
          %s226 = smul.u32 8, %s225
          %s227 = ssub.s32 128, %s226
          %s228 = sshll.u32 %s227, 4
          %229 = vsyncadd %s218, %s228
          %p230 = scmp.ne.s32.totalorder 0, %s226
          %s231 = smul.addr %s26, 18
          %s232 = sadd.s32 %s222, %s231
          %s233 = smul.addr %s232, 8
          %s234 = scalar_lea.hbm %s0, %s233
          %s235 = smul.u32 8, %s225
          %s236 = sshll.u32 %s234, 4
          %s237 = int_to_ptr.hbm [resolvable:$true] %s236
          %s238 = sshll.u32 %s221, 4
          %s239 = int_to_ptr.vmem [resolvable:$true] %s238
          %s240 = sshll.u32 %s235, 4
          %244 = dma.hbm_to_vmem [thread:$0]  (%p230), %s237, %s240, %s239, %s218, 128, 128, 8
        $region28: #{tpu_custom_call.1} parent=23 // pred_fallthru
          _
        // Predicated region
        $region29: #{tpu_custom_call.1} parent=23 // pred_check
          %p245 = pneg %p92
        $region30: #{tpu_custom_call.1} parent=23 // pred_check_branch
          %247 = sbr.rel (%p245) target = $region32
        $region31: #{tpu_custom_call.1} parent=23 // pred_region
          %s248 = sand.u32 %s19, 1
          %s249 = scalar_lea.sflag [#allocation6], %s248
          %s250 = sand.u32 %s82, 1
          %s251 = smul.addr %s250, 16
          %s252 = scalar_lea.vmem [#allocation5], %s251
          %s253 = sadd.s32 %s27, 1
          %s254 = smul.u32 %s253, 8
          %s255 = smul.u32 2, %s254
          %257 = vsyncadd %s249, 0
          %s258 = smul.addr %s26, 18
          %s259 = sadd.s32 %s255, %s258
          %s260 = smul.addr %s259, 8
          %s261 = scalar_lea.hbm %s1, %s260
          %s262 = sshll.u32 %s261, 4
          %s263 = int_to_ptr.hbm [resolvable:$true] %s262
          %s264 = sshll.u32 %s252, 4
          %s265 = int_to_ptr.vmem [resolvable:$true] %s264
          %270 = dma.hbm_to_vmem [thread:$0]  %s263, 256, %s265, %s249, 128, 128, 8
        $region32: #{tpu_custom_call.1} parent=23 // pred_fallthru
          _
      $region24: #{tpu_custom_call.1} parent=5 // pred_fallthru
        _
      %p271 = scmp.le.s32.totalorder 1, %s19
      %p272 = scmp.lt.s32.totalorder %s19, 3
      %p273 = pnand %p271, %p272
      %p274 = pneg %p273
      // Predicated region
      $region33: #{tpu_custom_call.1} parent=5 // pred_check
        _
      $region34: #{tpu_custom_call.1} parent=5 // pred_check_branch
        %276 = sbr.rel (%p273) target = $region36
      $region35: #{tpu_custom_call.1} parent=5 // pred_region
        %s277 = ssub.s32 %s19, 1
        %s278 = sand.u32 %s53, 1
        %s279 = scalar_lea.sflag [#allocation3], %s278
        %s280 = sand.u32 %s53, 1
        %s281 = smul.addr %s280, 128
        %s282 = scalar_lea.vmem [#allocation2], %s281
        // Predicated region
        $region37: #{tpu_custom_call.1} parent=35 // pred_check
          %p283 = pneg %p66
        $region38: #{tpu_custom_call.1} parent=35 // pred_check_branch
          %285 = sbr.rel (%p283) target = $region40
        $region39: #{tpu_custom_call.1} parent=35 // pred_region
          %287 = dma.done %s279, 2048
        $region40: #{tpu_custom_call.1} parent=35 // pred_fallthru
          _
        %s288 = sand.u32 %s24, 1
        %s289 = scalar_lea.sflag [#allocation6], %s288
        %s290 = sand.u32 %s85, 1
        %s291 = smul.addr %s290, 16
        %s292 = scalar_lea.vmem [#allocation5], %s291
        // Predicated region
        $region41: #{tpu_custom_call.1} parent=35 // pred_check
          %p293 = pneg %p98
        $region42: #{tpu_custom_call.1} parent=35 // pred_check_branch
          %295 = sbr.rel (%p293) target = $region44
        $region43: #{tpu_custom_call.1} parent=35 // pred_region
          %297 = dma.done %s289, 256
        $region44: #{tpu_custom_call.1} parent=35 // pred_fallthru
          _
        // Predicated region
        $region45: #{tpu_custom_call.1} parent=35 // pred_check
          %p298 = pneg %p119
        $region46: #{tpu_custom_call.1} parent=35 // pred_check_branch
          %300 = sbr.rel (%p298) target = $region48
        $region47: #{tpu_custom_call.1} parent=35 // pred_region
          %302 = dma.done [#allocation6], 8192
        $region48: #{tpu_custom_call.1} parent=35 // pred_fallthru
          _
        %s303 = sand.u32 %s53, 1
        %s304 = scalar_lea.sflag [#allocation3], %s303
        %s305 = sand.u32 %s53, 1
        %s306 = smul.addr %s305, 128
        %s307 = scalar_lea.vmem [#allocation2], %s306
        %p308 = pneg %p66
        %p309 = pneg %p63
        %s310 = sand.u32 %s24, 1
        %s311 = scalar_lea.sflag [#allocation6], %s310
        %s312 = sand.u32 %s85, 1
        %s313 = smul.addr %s312, 16
        %s314 = scalar_lea.vmem [#allocation5], %s313
        %p315 = pneg %p98
        %p316 = pneg %p95
        %p317 = pneg %p119
        %p318 = pneg %p116
        %p319 = scmp.lt.s32.totalorder %s31, 0
        %s320 = scalar_select %p319, %s31, 0
        %s321 = scalar_lea.vmem %s3, %s320
        %p322 = pneg %p145
        %p323 = pneg %p142
        %p324 = pneg %p175
        %p325 = pneg %p172
        %s326 = sand.u32 %s162, 1
        %s327 = scalar_lea.sflag [#allocation4], %s326
        %s328 = sand.u32 %s162, 1
        %s329 = smul.addr %s328, 128
        %s330 = scalar_lea.vmem [#allocation8], %s329
        %s331 = smul.u32 16, %s30
        %s332 = ssub.s32 18, %s331
        %p333 = scmp.lt.s32.totalorder %s332, 16
        %s334 = scalar_select %p333, %s332, 16
        %s335 = smul.u32 8, %s334
        %s336 = sadd.s32 %s30, 1
        %s337 = smul.u32 %s336, 8
        %s338 = smul.u32 2, %s337
        %p339 = scmp.lt.s32.totalorder %s31, 0
        %s340 = scalar_select %p339, %s31, 0
        %s341 = scalar_lea.vmem %s3, %s340
        %s342 = smul.u32 16, %s30
        %s343 = smul.u32 %s31, 4
        %s344 = smul.u32 %s343, 128
        %s345 = scalar_lea.vmem [#allocation7], %s344
        %v346 = vld [vmem:[%s345] sm:$0xff]
        %v347 = vld [vmem:[%s345 + $0x8] sm:$0xff]
        %v348 = vld [vmem:[%s345 + $0x10] sm:$0xff]
        %v349 = vld [vmem:[%s345 + $0x18] sm:$0xff]
        %v350 = vld [vmem:[%s345 + $0x20] sm:$0xff]
        %v351 = vld [vmem:[%s345 + $0x28] sm:$0xff]
        %v352 = vld [vmem:[%s345 + $0x30] sm:$0xff]
        %v353 = vld [vmem:[%s345 + $0x38] sm:$0xff]
        %v354 = vld [vmem:[%s345 + $0x40] sm:$0xff]
        %v355 = vld [vmem:[%s345 + $0x48] sm:$0xff]
        %v356 = vld [vmem:[%s345 + $0x50] sm:$0xff]
        %v357 = vld [vmem:[%s345 + $0x58] sm:$0xff]
        %v358 = vld [vmem:[%s345 + $0x60] sm:$0xff]
        %v359 = vld [vmem:[%s345 + $0x68] sm:$0xff]
        %v360 = vld [vmem:[%s345 + $0x70] sm:$0xff]
        %v361 = vld [vmem:[%s345 + $0x78] sm:$0xff]
        %s362 = sadd.s32 %s343, 1
        %s363 = smul.u32 %s362, 128
        %s364 = scalar_lea.vmem [#allocation7], %s363
        %v365 = vld [vmem:[%s364] sm:$0xff]
        %v366 = vld [vmem:[%s364 + $0x8] sm:$0xff]
        %v367 = vld [vmem:[%s364 + $0x10] sm:$0xff]
        %v368 = vld [vmem:[%s364 + $0x18] sm:$0xff]
        %v369 = vld [vmem:[%s364 + $0x20] sm:$0xff]
        %v370 = vld [vmem:[%s364 + $0x28] sm:$0xff]
        %v371 = vld [vmem:[%s364 + $0x30] sm:$0xff]
        %v372 = vld [vmem:[%s364 + $0x38] sm:$0xff]
        %v373 = vld [vmem:[%s364 + $0x40] sm:$0xff]
        %v374 = vld [vmem:[%s364 + $0x48] sm:$0xff]
        %v375 = vld [vmem:[%s364 + $0x50] sm:$0xff]
        %v376 = vld [vmem:[%s364 + $0x58] sm:$0xff]
        %v377 = vld [vmem:[%s364 + $0x60] sm:$0xff]
        %v378 = vld [vmem:[%s364 + $0x68] sm:$0xff]
        %v379 = vld [vmem:[%s364 + $0x70] sm:$0xff]
        %v380 = vld [vmem:[%s364 + $0x78] sm:$0xff]
        %s381 = sadd.s32 %s343, 2
        %s382 = smul.u32 %s381, 128
        %s383 = scalar_lea.vmem [#allocation7], %s382
        %v384 = vld [vmem:[%s383] sm:$0xff]
        %v385 = vld [vmem:[%s383 + $0x8] sm:$0xff]
        %v386 = vld [vmem:[%s383 + $0x10] sm:$0xff]
        %v387 = vld [vmem:[%s383 + $0x18] sm:$0xff]
        %v388 = vld [vmem:[%s383 + $0x20] sm:$0xff]
        %v389 = vld [vmem:[%s383 + $0x28] sm:$0xff]
        %v390 = vld [vmem:[%s383 + $0x30] sm:$0xff]
        %v391 = vld [vmem:[%s383 + $0x38] sm:$0xff]
        %v392 = vld [vmem:[%s383 + $0x40] sm:$0xff]
        %v393 = vld [vmem:[%s383 + $0x48] sm:$0xff]
        %v394 = vld [vmem:[%s383 + $0x50] sm:$0xff]
        %v395 = vld [vmem:[%s383 + $0x58] sm:$0xff]
        %v396 = vld [vmem:[%s383 + $0x60] sm:$0xff]
        %v397 = vld [vmem:[%s383 + $0x68] sm:$0xff]
        %v398 = vld [vmem:[%s383 + $0x70] sm:$0xff]
        %v399 = vld [vmem:[%s383 + $0x78] sm:$0xff]
        %s400 = sadd.s32 %s343, 3
        %s401 = smul.u32 %s400, 128
        %s402 = scalar_lea.vmem [#allocation7], %s401
        %v403 = vld [vmem:[%s402] sm:$0xff]
        %v404 = vld [vmem:[%s402 + $0x8] sm:$0xff]
        %v405 = vld [vmem:[%s402 + $0x10] sm:$0xff]
        %v406 = vld [vmem:[%s402 + $0x18] sm:$0xff]
        %v407 = vld [vmem:[%s402 + $0x20] sm:$0xff]
        %v408 = vld [vmem:[%s402 + $0x28] sm:$0xff]
        %v409 = vld [vmem:[%s402 + $0x30] sm:$0xff]
        %v410 = vld [vmem:[%s402 + $0x38] sm:$0xff]
        %v411 = vld [vmem:[%s402 + $0x40] sm:$0xff]
        %v412 = vld [vmem:[%s402 + $0x48] sm:$0xff]
        %v413 = vld [vmem:[%s402 + $0x50] sm:$0xff]
        %v414 = vld [vmem:[%s402 + $0x58] sm:$0xff]
        %v415 = vld [vmem:[%s402 + $0x60] sm:$0xff]
        %v416 = vld [vmem:[%s402 + $0x68] sm:$0xff]
        %v417 = vld [vmem:[%s402 + $0x70] sm:$0xff]
        %v418 = vld [vmem:[%s402 + $0x78] sm:$0xff]
        %v419 = vld [vmem:[%s341] sm:$0x1]
        %v420 = vld [vmem:[%s282] sm:$0xff]
        %v421 = vld [vmem:[%s282 + $0x8] sm:$0xff]
        %v422 = vld [vmem:[%s282 + $0x10] sm:$0xff]
        %v423 = vld [vmem:[%s282 + $0x18] sm:$0xff]
        %v424 = vld [vmem:[%s282 + $0x20] sm:$0xff]
        %v425 = vld [vmem:[%s282 + $0x28] sm:$0xff]
        %v426 = vld [vmem:[%s282 + $0x30] sm:$0xff]
        %v427 = vld [vmem:[%s282 + $0x38] sm:$0xff]
        %v428 = vld [vmem:[%s282 + $0x40] sm:$0xff]
        %v429 = vld [vmem:[%s282 + $0x48] sm:$0xff]
        %v430 = vld [vmem:[%s282 + $0x50] sm:$0xff]
        %v431 = vld [vmem:[%s282 + $0x58] sm:$0xff]
        %v432 = vld [vmem:[%s282 + $0x60] sm:$0xff]
        %v433 = vld [vmem:[%s282 + $0x68] sm:$0xff]
        %v434 = vld [vmem:[%s282 + $0x10] sm:$0xff]
        %v435 = vld [vmem:[%s282 + $0x18] sm:$0xff]
        %v436 = vld [vmem:[%s282 + $0x20] sm:$0xff]
        %v437 = vld [vmem:[%s282 + $0x28] sm:$0xff]
        %v438 = vld [vmem:[%s282 + $0x30] sm:$0xff]
        %v439 = vld [vmem:[%s282 + $0x38] sm:$0xff]
        %v440 = vld [vmem:[%s282 + $0x40] sm:$0xff]
        %v441 = vld [vmem:[%s282 + $0x48] sm:$0xff]
        %v442 = vld [vmem:[%s282 + $0x50] sm:$0xff]
        %v443 = vld [vmem:[%s282 + $0x58] sm:$0xff]
        %v444 = vld [vmem:[%s282 + $0x60] sm:$0xff]
        %v445 = vld [vmem:[%s282 + $0x68] sm:$0xff]
        %v446 = vld [vmem:[%s282 + $0x70] sm:$0xff]
        %v447 = vld [vmem:[%s282 + $0x78] sm:$0xff]
        %448 = vmatpush.msra.mxu0 %v399
        %449 = vmatpush.msra.mxu0 %v398
        %450 = vmatpush.msra.mxu0 %v397
        %451 = vmatpush.msra.mxu0 %v396
        %452 = vmatpush.msra.mxu0 %v395
        %453 = vmatpush.msra.mxu0 %v394
        %454 = vmatpush.msra.mxu0 %v393
        %455 = vmatpush.msra.mxu0 %v392
        %456 = vmatpush.msra.mxu0 %v391
        %457 = vmatpush.msra.mxu0 %v390
        %458 = vmatpush.msra.mxu0 %v389
        %459 = vmatpush.msra.mxu0 %v388
        %460 = vmatpush.msra.mxu0 %v387
        %461 = vmatpush.msra.mxu0 %v386
        %462 = vmatpush.msra.mxu0 %v385
        %463 = vmatpush.msra.mxu0 %v384
        %464 = vmatmul.f32.gmra.mxu0 %v434
        %v465 = vpop.f32.mrf.mxu0
        %v466 = vadd.f32 0.0, %v465
        %467 = vmatmul.f32.gmra.mxu0 %v435
        %v468 = vpop.f32.mrf.mxu0
        %v469 = vadd.f32 0.0, %v468
        %470 = vmatmul.f32.gmra.mxu0 %v436
        %v471 = vpop.f32.mrf.mxu0
        %v472 = vadd.f32 0.0, %v471
        %473 = vmatmul.f32.gmra.mxu0 %v437
        %v474 = vpop.f32.mrf.mxu0
        %v475 = vadd.f32 0.0, %v474
        %476 = vmatmul.f32.gmra.mxu0 %v438
        %v477 = vpop.f32.mrf.mxu0
        %v478 = vadd.f32 0.0, %v477
        %479 = vmatmul.f32.gmra.mxu0 %v439
        %v480 = vpop.f32.mrf.mxu0
        %v481 = vadd.f32 0.0, %v480
        %482 = vmatmul.f32.gmra.mxu0 %v440
        %v483 = vpop.f32.mrf.mxu0
        %v484 = vadd.f32 0.0, %v483
        %485 = vmatmul.f32.gmra.mxu0 %v441
        %v486 = vpop.f32.mrf.mxu0
        %v487 = vadd.f32 0.0, %v486
        %488 = vmatmul.f32.gmra.mxu0 %v442
        %v489 = vpop.f32.mrf.mxu0
        %v490 = vadd.f32 0.0, %v489
        %491 = vmatmul.f32.gmra.mxu0 %v443
        %v492 = vpop.f32.mrf.mxu0
        %v493 = vadd.f32 0.0, %v492
        %494 = vmatmul.f32.gmra.mxu0 %v444
        %v495 = vpop.f32.mrf.mxu0
        %v496 = vadd.f32 0.0, %v495
        %497 = vmatmul.f32.gmra.mxu0 %v445
        %v498 = vpop.f32.mrf.mxu0
        %v499 = vadd.f32 0.0, %v498
        %500 = vmatmul.f32.gmra.mxu0 %v446
        %v501 = vpop.f32.mrf.mxu0
        %v502 = vadd.f32 0.0, %v501
        %503 = vmatmul.f32.gmra.mxu0 %v447
        %v504 = vpop.f32.mrf.mxu0
        %v505 = vadd.f32 0.0, %v504
        %506 = vdwg.mxu0
        %507 = vmatpush.msra.mxu0 %v361
        %508 = vmatpush.msra.mxu0 %v360
        %509 = vmatpush.msra.mxu0 %v359
        %510 = vmatpush.msra.mxu0 %v358
        %511 = vmatpush.msra.mxu0 %v357
        %512 = vmatpush.msra.mxu0 %v356
        %513 = vmatpush.msra.mxu0 %v355
        %514 = vmatpush.msra.mxu0 %v354
        %515 = vmatpush.msra.mxu0 %v353
        %516 = vmatpush.msra.mxu0 %v352
        %517 = vmatpush.msra.mxu0 %v351
        %518 = vmatpush.msra.mxu0 %v350
        %519 = vmatpush.msra.mxu0 %v349
        %520 = vmatpush.msra.mxu0 %v348
        %521 = vmatpush.msra.mxu0 %v347
        %522 = vmatpush.msra.mxu0 %v346
        %523 = vmatmul.f32.gmra.mxu0 %v420
        %v524 = vpop.f32.mrf.mxu0
        %v525 = vadd.f32 %v466, %v524
        %526 = vmatmul.f32.gmra.mxu0 %v421
        %v527 = vpop.f32.mrf.mxu0
        %v528 = vadd.f32 %v469, %v527
        %529 = vmatmul.f32.gmra.mxu0 %v422
        %v530 = vpop.f32.mrf.mxu0
        %v531 = vadd.f32 %v472, %v530
        %532 = vmatmul.f32.gmra.mxu0 %v423
        %v533 = vpop.f32.mrf.mxu0
        %v534 = vadd.f32 %v475, %v533
        %535 = vmatmul.f32.gmra.mxu0 %v424
        %v536 = vpop.f32.mrf.mxu0
        %v537 = vadd.f32 %v478, %v536
        %538 = vmatmul.f32.gmra.mxu0 %v425
        %v539 = vpop.f32.mrf.mxu0
        %v540 = vadd.f32 %v481, %v539
        %541 = vmatmul.f32.gmra.mxu0 %v426
        %v542 = vpop.f32.mrf.mxu0
        %v543 = vadd.f32 %v484, %v542
        %544 = vmatmul.f32.gmra.mxu0 %v427
        %v545 = vpop.f32.mrf.mxu0
        %v546 = vadd.f32 %v487, %v545
        %547 = vmatmul.f32.gmra.mxu0 %v428
        %v548 = vpop.f32.mrf.mxu0
        %v549 = vadd.f32 %v490, %v548
        %550 = vmatmul.f32.gmra.mxu0 %v429
        %v551 = vpop.f32.mrf.mxu0
        %v552 = vadd.f32 %v493, %v551
        %553 = vmatmul.f32.gmra.mxu0 %v430
        %v554 = vpop.f32.mrf.mxu0
        %v555 = vadd.f32 %v496, %v554
        %556 = vmatmul.f32.gmra.mxu0 %v431
        %v557 = vpop.f32.mrf.mxu0
        %v558 = vadd.f32 %v499, %v557
        %559 = vmatmul.f32.gmra.mxu0 %v432
        %v560 = vpop.f32.mrf.mxu0
        %v561 = vadd.f32 %v502, %v560
        %562 = vmatmul.f32.gmra.mxu0 %v433
        %v563 = vpop.f32.mrf.mxu0
        %v564 = vadd.f32 %v505, %v563
        %565 = vdwg.mxu0
        %566 = vmatpush.msra.mxu0 %v418
        %567 = vmatpush.msra.mxu0 %v417
        %568 = vmatpush.msra.mxu0 %v416
        %569 = vmatpush.msra.mxu0 %v415
        %570 = vmatpush.msra.mxu0 %v414
        %571 = vmatpush.msra.mxu0 %v413
        %572 = vmatpush.msra.mxu0 %v412
        %573 = vmatpush.msra.mxu0 %v411
        %574 = vmatpush.msra.mxu0 %v410
        %575 = vmatpush.msra.mxu0 %v409
        %576 = vmatpush.msra.mxu0 %v408
        %577 = vmatpush.msra.mxu0 %v407
        %578 = vmatpush.msra.mxu0 %v406
        %579 = vmatpush.msra.mxu0 %v405
        %580 = vmatpush.msra.mxu0 %v404
        %581 = vmatpush.msra.mxu0 %v403
        %582 = vmatmul.f32.gmra.mxu0 %v434
        %v583 = vpop.f32.mrf.mxu0
        %v584 = vadd.f32 0.0, %v583
        %585 = vmatmul.f32.gmra.mxu0 %v435
        %v586 = vpop.f32.mrf.mxu0
        %v587 = vadd.f32 0.0, %v586
        %588 = vmatmul.f32.gmra.mxu0 %v436
        %v589 = vpop.f32.mrf.mxu0
        %v590 = vadd.f32 0.0, %v589
        %591 = vmatmul.f32.gmra.mxu0 %v437
        %v592 = vpop.f32.mrf.mxu0
        %v593 = vadd.f32 0.0, %v592
        %594 = vmatmul.f32.gmra.mxu0 %v438
        %v595 = vpop.f32.mrf.mxu0
        %v596 = vadd.f32 0.0, %v595
        %597 = vmatmul.f32.gmra.mxu0 %v439
        %v598 = vpop.f32.mrf.mxu0
        %v599 = vadd.f32 0.0, %v598
        %600 = vmatmul.f32.gmra.mxu0 %v440
        %v601 = vpop.f32.mrf.mxu0
        %v602 = vadd.f32 0.0, %v601
        %603 = vmatmul.f32.gmra.mxu0 %v441
        %v604 = vpop.f32.mrf.mxu0
        %v605 = vadd.f32 0.0, %v604
        %606 = vmatmul.f32.gmra.mxu0 %v442
        %v607 = vpop.f32.mrf.mxu0
        %v608 = vadd.f32 0.0, %v607
        %609 = vmatmul.f32.gmra.mxu0 %v443
        %v610 = vpop.f32.mrf.mxu0
        %v611 = vadd.f32 0.0, %v610
        %612 = vmatmul.f32.gmra.mxu0 %v444
        %v613 = vpop.f32.mrf.mxu0
        %v614 = vadd.f32 0.0, %v613
        %615 = vmatmul.f32.gmra.mxu0 %v445
        %v616 = vpop.f32.mrf.mxu0
        %v617 = vadd.f32 0.0, %v616
        %618 = vmatmul.f32.gmra.mxu0 %v446
        %v619 = vpop.f32.mrf.mxu0
        %v620 = vadd.f32 0.0, %v619
        %621 = vmatmul.f32.gmra.mxu0 %v447
        %v622 = vpop.f32.mrf.mxu0
        %v623 = vadd.f32 0.0, %v622
        %624 = vdwg.mxu0
        %625 = vmatpush.msra.mxu0 %v380
        %626 = vmatpush.msra.mxu0 %v379
        %627 = vmatpush.msra.mxu0 %v378
        %628 = vmatpush.msra.mxu0 %v377
        %629 = vmatpush.msra.mxu0 %v376
        %630 = vmatpush.msra.mxu0 %v375
        %631 = vmatpush.msra.mxu0 %v374
        %632 = vmatpush.msra.mxu0 %v373
        %633 = vmatpush.msra.mxu0 %v372
        %634 = vmatpush.msra.mxu0 %v371
        %635 = vmatpush.msra.mxu0 %v370
        %636 = vmatpush.msra.mxu0 %v369
        %637 = vmatpush.msra.mxu0 %v368
        %638 = vmatpush.msra.mxu0 %v367
        %639 = vmatpush.msra.mxu0 %v366
        %640 = vmatpush.msra.mxu0 %v365
        %641 = vmatmul.f32.gmra.mxu0 %v420
        %v642 = vpop.f32.mrf.mxu0
        %v643 = vadd.f32 %v584, %v642
        %644 = vmatmul.f32.gmra.mxu0 %v421
        %v645 = vpop.f32.mrf.mxu0
        %v646 = vadd.f32 %v587, %v645
        %647 = vmatmul.f32.gmra.mxu0 %v422
        %v648 = vpop.f32.mrf.mxu0
        %v649 = vadd.f32 %v590, %v648
        %650 = vmatmul.f32.gmra.mxu0 %v423
        %v651 = vpop.f32.mrf.mxu0
        %v652 = vadd.f32 %v593, %v651
        %653 = vmatmul.f32.gmra.mxu0 %v424
        %v654 = vpop.f32.mrf.mxu0
        %v655 = vadd.f32 %v596, %v654
        %656 = vmatmul.f32.gmra.mxu0 %v425
        %v657 = vpop.f32.mrf.mxu0
        %v658 = vadd.f32 %v599, %v657
        %659 = vmatmul.f32.gmra.mxu0 %v426
        %v660 = vpop.f32.mrf.mxu0
        %v661 = vadd.f32 %v602, %v660
        %662 = vmatmul.f32.gmra.mxu0 %v427
        %v663 = vpop.f32.mrf.mxu0
        %v664 = vadd.f32 %v605, %v663
        %665 = vmatmul.f32.gmra.mxu0 %v428
        %v666 = vpop.f32.mrf.mxu0
        %v667 = vadd.f32 %v608, %v666
        %668 = vmatmul.f32.gmra.mxu0 %v429
        %v669 = vpop.f32.mrf.mxu0
        %v670 = vadd.f32 %v611, %v669
        %671 = vmatmul.f32.gmra.mxu0 %v430
        %v672 = vpop.f32.mrf.mxu0
        %v673 = vadd.f32 %v614, %v672
        %674 = vmatmul.f32.gmra.mxu0 %v431
        %v675 = vpop.f32.mrf.mxu0
        %v676 = vadd.f32 %v617, %v675
        %677 = vmatmul.f32.gmra.mxu0 %v432
        %v678 = vpop.f32.mrf.mxu0
        %v679 = vadd.f32 %v620, %v678
        %680 = vmatmul.f32.gmra.mxu0 %v433
        %v681 = vpop.f32.mrf.mxu0
        %v682 = vadd.f32 %v623, %v681
        %683 = vdwg.mxu0
        %vm698 = vcmask 1046528
        %v699 = vrot.slane %v643, 1
        %v700 = vrot.slane %v646, 1
        %v701 = vsel %vm698, %v699, %v700
        %v702 = vrot.slane %v649, 1
        %v703 = vsel %vm698, %v700, %v702
        %v704 = vrot.slane %v652, 1
        %v705 = vsel %vm698, %v702, %v704
        %v706 = vrot.slane %v655, 1
        %v707 = vsel %vm698, %v704, %v706
        %v708 = vrot.slane %v658, 1
        %v709 = vsel %vm698, %v706, %v708
        %v710 = vrot.slane %v661, 1
        %v711 = vsel %vm698, %v708, %v710
        %v712 = vrot.slane %v664, 1
        %v713 = vsel %vm698, %v710, %v712
        %v714 = vrot.slane %v667, 1
        %v715 = vsel %vm698, %v712, %v714
        %v716 = vrot.slane %v670, 1
        %v717 = vsel %vm698, %v714, %v716
        %v718 = vrot.slane %v673, 1
        %v719 = vsel %vm698, %v716, %v718
        %v720 = vrot.slane %v676, 1
        %v721 = vsel %vm698, %v718, %v720
        %v722 = vrot.slane %v679, 1
        %v723 = vsel %vm698, %v720, %v722
        %v724 = vrot.slane %v682, 1
        %v725 = vsel %vm698, %v722, %v724
        %v740 = vsel %vm698, %v724, 0.0
        %v741 = vadd.f32 %v525, %v701
        %v742 = vadd.f32 %v528, %v703
        %v743 = vadd.f32 %v531, %v705
        %v744 = vadd.f32 %v534, %v707
        %v745 = vadd.f32 %v537, %v709
        %v746 = vadd.f32 %v540, %v711
        %v747 = vadd.f32 %v543, %v713
        %v748 = vadd.f32 %v546, %v715
        %v749 = vadd.f32 %v549, %v717
        %v750 = vadd.f32 %v552, %v719
        %v751 = vadd.f32 %v555, %v721
        %v752 = vadd.f32 %v558, %v723
        %v753 = vadd.f32 %v561, %v725
        %v754 = vadd.f32 %v564, %v740
        %v756 = vperm.slane %v419, 0
        %v758 = vadd.f32 %v741, %v756
        %v759 = vadd.f32 %v742, %v756
        %v760 = vadd.f32 %v743, %v756
        %v761 = vadd.f32 %v744, %v756
        %v762 = vadd.f32 %v745, %v756
        %v763 = vadd.f32 %v746, %v756
        %v764 = vadd.f32 %v747, %v756
        %v765 = vadd.f32 %v748, %v756
        %v766 = vadd.f32 %v749, %v756
        %v767 = vadd.f32 %v750, %v756
        %v768 = vadd.f32 %v751, %v756
        %v769 = vadd.f32 %v752, %v756
        %v770 = vadd.f32 %v753, %v756
        %v771 = vadd.f32 %v754, %v756
        %vm772 = vcmp.ge.f32.partialorder %v758, 0.0
        %vm773 = vcmp.ge.f32.partialorder %v759, 0.0
        %vm774 = vcmp.ge.f32.partialorder %v760, 0.0
        %vm775 = vcmp.ge.f32.partialorder %v761, 0.0
        %vm776 = vcmp.ge.f32.partialorder %v762, 0.0
        %vm777 = vcmp.ge.f32.partialorder %v763, 0.0
        %vm778 = vcmp.ge.f32.partialorder %v764, 0.0
        %vm779 = vcmp.ge.f32.partialorder %v765, 0.0
        %vm780 = vcmp.ge.f32.partialorder %v766, 0.0
        %vm781 = vcmp.ge.f32.partialorder %v767, 0.0
        %vm782 = vcmp.ge.f32.partialorder %v768, 0.0
        %vm783 = vcmp.ge.f32.partialorder %v769, 0.0
        %vm784 = vcmp.ge.f32.partialorder %v770, 0.0
        %vm785 = vcmp.ge.f32.partialorder %v771, 0.0
        %v786 = vmul.f32 %v758, 0.01
        %v787 = vmul.f32 %v759, 0.01
        %v788 = vmul.f32 %v760, 0.01
        %v789 = vmul.f32 %v761, 0.01
        %v790 = vmul.f32 %v762, 0.01
        %v791 = vmul.f32 %v763, 0.01
        %v792 = vmul.f32 %v764, 0.01
        %v793 = vmul.f32 %v765, 0.01
        %v794 = vmul.f32 %v766, 0.01
        %v795 = vmul.f32 %v767, 0.01
        %v796 = vmul.f32 %v768, 0.01
        %v797 = vmul.f32 %v769, 0.01
        %v798 = vmul.f32 %v770, 0.01
        %v799 = vmul.f32 %v771, 0.01
        %v800 = vsel %vm772, %v758, %v786
        %v801 = vsel %vm773, %v759, %v787
        %v802 = vsel %vm774, %v760, %v788
        %v803 = vsel %vm775, %v761, %v789
        %v804 = vsel %vm776, %v762, %v790
        %v805 = vsel %vm777, %v763, %v791
        %v806 = vsel %vm778, %v764, %v792
        %v807 = vsel %vm779, %v765, %v793
        %v808 = vsel %vm780, %v766, %v794
        %v809 = vsel %vm781, %v767, %v795
        %v810 = vsel %vm782, %v768, %v796
        %v811 = vsel %vm783, %v769, %v797
        %v812 = vsel %vm784, %v770, %v798
        %v813 = vsel %vm785, %v771, %v799
        %814 = vst [vmem:[%s330] sm:$0xff] %v800
        %815 = vst [vmem:[%s330 + $0x8] sm:$0xff] %v801
        %816 = vst [vmem:[%s330 + $0x10] sm:$0xff] %v802
        %817 = vst [vmem:[%s330 + $0x18] sm:$0xff] %v803
        %818 = vst [vmem:[%s330 + $0x20] sm:$0xff] %v804
        %819 = vst [vmem:[%s330 + $0x28] sm:$0xff] %v805
        %820 = vst [vmem:[%s330 + $0x30] sm:$0xff] %v806
        %821 = vst [vmem:[%s330 + $0x38] sm:$0xff] %v807
        %822 = vst [vmem:[%s330 + $0x40] sm:$0xff] %v808
        %823 = vst [vmem:[%s330 + $0x48] sm:$0xff] %v809
        %824 = vst [vmem:[%s330 + $0x50] sm:$0xff] %v810
        %825 = vst [vmem:[%s330 + $0x58] sm:$0xff] %v811
        %826 = vst [vmem:[%s330 + $0x60] sm:$0xff] %v812
        %827 = vst [vmem:[%s330 + $0x68] sm:$0xff] %v813
        %v828 = vld [vmem:[%s282 + $0x70] sm:$0xff]
        %v829 = vld [vmem:[%s282 + $0x78] sm:$0xff]
        %v830 = vld [vmem:[%s292] sm:$0xff]
        %v831 = vld [vmem:[%s292 + $0x8] sm:$0xff]
        %832 = vmatpush.msra.mxu0 %v399
        %833 = vmatpush.msra.mxu0 %v398
        %834 = vmatpush.msra.mxu0 %v397
        %835 = vmatpush.msra.mxu0 %v396
        %836 = vmatpush.msra.mxu0 %v395
        %837 = vmatpush.msra.mxu0 %v394
        %838 = vmatpush.msra.mxu0 %v393
        %839 = vmatpush.msra.mxu0 %v392
        %840 = vmatpush.msra.mxu0 %v391
        %841 = vmatpush.msra.mxu0 %v390
        %842 = vmatpush.msra.mxu0 %v389
        %843 = vmatpush.msra.mxu0 %v388
        %844 = vmatpush.msra.mxu0 %v387
        %845 = vmatpush.msra.mxu0 %v386
        %846 = vmatpush.msra.mxu0 %v385
        %847 = vmatpush.msra.mxu0 %v384
        %848 = vmatmul.f32.gmra.mxu0 %v830
        %v849 = vpop.f32.mrf.mxu0
        %v850 = vadd.f32 0.0, %v849
        %851 = vmatmul.f32.gmra.mxu0 %v831
        %v852 = vpop.f32.mrf.mxu0
        %v853 = vadd.f32 0.0, %v852
        %854 = vdwg.mxu0
        %855 = vmatpush.msra.mxu0 %v361
        %856 = vmatpush.msra.mxu0 %v360
        %857 = vmatpush.msra.mxu0 %v359
        %858 = vmatpush.msra.mxu0 %v358
        %859 = vmatpush.msra.mxu0 %v357
        %860 = vmatpush.msra.mxu0 %v356
        %861 = vmatpush.msra.mxu0 %v355
        %862 = vmatpush.msra.mxu0 %v354
        %863 = vmatpush.msra.mxu0 %v353
        %864 = vmatpush.msra.mxu0 %v352
        %865 = vmatpush.msra.mxu0 %v351
        %866 = vmatpush.msra.mxu0 %v350
        %867 = vmatpush.msra.mxu0 %v349
        %868 = vmatpush.msra.mxu0 %v348
        %869 = vmatpush.msra.mxu0 %v347
        %870 = vmatpush.msra.mxu0 %v346
        %871 = vmatmul.f32.gmra.mxu0 %v828
        %v872 = vpop.f32.mrf.mxu0
        %v873 = vadd.f32 %v850, %v872
        %874 = vmatmul.f32.gmra.mxu0 %v829
        %v875 = vpop.f32.mrf.mxu0
        %v876 = vadd.f32 %v853, %v875
        %877 = vdwg.mxu0
        %878 = vmatpush.msra.mxu0 %v418
        %879 = vmatpush.msra.mxu0 %v417
        %880 = vmatpush.msra.mxu0 %v416
        %881 = vmatpush.msra.mxu0 %v415
        %882 = vmatpush.msra.mxu0 %v414
        %883 = vmatpush.msra.mxu0 %v413
        %884 = vmatpush.msra.mxu0 %v412
        %885 = vmatpush.msra.mxu0 %v411
        %886 = vmatpush.msra.mxu0 %v410
        %887 = vmatpush.msra.mxu0 %v409
        %888 = vmatpush.msra.mxu0 %v408
        %889 = vmatpush.msra.mxu0 %v407
        %890 = vmatpush.msra.mxu0 %v406
        %891 = vmatpush.msra.mxu0 %v405
        %892 = vmatpush.msra.mxu0 %v404
        %893 = vmatpush.msra.mxu0 %v403
        %894 = vmatmul.f32.gmra.mxu0 %v830
        %v895 = vpop.f32.mrf.mxu0
        %v896 = vadd.f32 0.0, %v895
        %897 = vmatmul.f32.gmra.mxu0 %v831
        %v898 = vpop.f32.mrf.mxu0
        %v899 = vadd.f32 0.0, %v898
        %900 = vdwg.mxu0
        %901 = vmatpush.msra.mxu0 %v380
        %902 = vmatpush.msra.mxu0 %v379
        %903 = vmatpush.msra.mxu0 %v378
        %904 = vmatpush.msra.mxu0 %v377
        %905 = vmatpush.msra.mxu0 %v376
        %906 = vmatpush.msra.mxu0 %v375
        %907 = vmatpush.msra.mxu0 %v374
        %908 = vmatpush.msra.mxu0 %v373
        %909 = vmatpush.msra.mxu0 %v372
        %910 = vmatpush.msra.mxu0 %v371
        %911 = vmatpush.msra.mxu0 %v370
        %912 = vmatpush.msra.mxu0 %v369
        %913 = vmatpush.msra.mxu0 %v368
        %914 = vmatpush.msra.mxu0 %v367
        %915 = vmatpush.msra.mxu0 %v366
        %916 = vmatpush.msra.mxu0 %v365
        %917 = vmatmul.f32.gmra.mxu0 %v828
        %v918 = vpop.f32.mrf.mxu0
        %v919 = vadd.f32 %v896, %v918
        %920 = vmatmul.f32.gmra.mxu0 %v829
        %v921 = vpop.f32.mrf.mxu0
        %v922 = vadd.f32 %v899, %v921
        %923 = vdwg.mxu0
        %v926 = vrot.slane %v919, 1
        %v927 = vrot.slane %v922, 1
        %v928 = vsel %vm698, %v926, %v927
        %v931 = vsel %vm698, %v927, 0.0
        %v932 = vadd.f32 %v873, %v928
        %v933 = vadd.f32 %v876, %v931
        %v934 = vadd.f32 %v932, %v756
        %v935 = vadd.f32 %v933, %v756
        %vm936 = vcmp.ge.f32.partialorder %v934, 0.0
        %vm937 = vcmp.ge.f32.partialorder %v935, 0.0
        %v938 = vmul.f32 %v934, 0.01
        %v939 = vmul.f32 %v935, 0.01
        %v940 = vsel %vm936, %v934, %v938
        %v941 = vsel %vm937, %v935, %v939
        %942 = vst [vmem:[%s330 + $0x70] sm:$0xff] %v940
        %943 = vst [vmem:[%s330 + $0x78] sm:$0xff] %v941
        %s944 = sand.u32 %s162, 1
        %s945 = scalar_lea.sflag [#allocation4], %s944
        %s946 = sand.u32 %s162, 1
        %s947 = smul.addr %s946, 128
        %s948 = scalar_lea.vmem [#allocation8], %s947
        // Predicated region
        $region49: #{tpu_custom_call.1} parent=35 // pred_check
          %p949 = pneg %p172
        $region50: #{tpu_custom_call.1} parent=35 // pred_check_branch
          %951 = sbr.rel (%p949) target = $region52
        $region51: #{tpu_custom_call.1} parent=35 // pred_region
          %s952 = smul.u32 16, %s30
          %954 = vsyncadd %s945, 0
          %s955 = sadd.s32 %s31, %s952
          %s956 = smul.addr %s29, 16
          %s957 = sadd.s32 %s955, %s956
          %s958 = smul.addr %s957, 8
          %s959 = scalar_lea.hbm %s4, %s958
          %s960 = sshll.u32 %s948, 4
          %s961 = int_to_ptr.vmem [resolvable:$true] %s960
          %s962 = sshll.u32 %s959, 4
          %s963 = int_to_ptr.hbm [resolvable:$true] %s962
          %968 = dma.vmem_to_hbm [thread:$0]  %s961, 2048, %s963, %s945, 128, 128, 8
        $region52: #{tpu_custom_call.1} parent=35 // pred_fallthru
          _
      $region36: #{tpu_custom_call.1} parent=5 // pred_fallthru
        _
      %p969 = scmp.le.s32.totalorder 2, %s19
      // Predicated region
      $region53: #{tpu_custom_call.1} parent=5 // pred_check
        %p970 = pneg %p969
      $region54: #{tpu_custom_call.1} parent=5 // pred_check_branch
        %972 = sbr.rel (%p970) target = $region56
      $region55: #{tpu_custom_call.1} parent=5 // pred_region
        %s973 = ssub.s32 %s19, 2
        // Predicated region
        $region57: #{tpu_custom_call.1} parent=55 // pred_check
          %p974 = pneg %p178
        $region58: #{tpu_custom_call.1} parent=55 // pred_check_branch
          %976 = sbr.rel (%p974) target = $region60
        $region59: #{tpu_custom_call.1} parent=55 // pred_region
          %s977 = sand.u32 %s163, 1
          %s978 = scalar_lea.sflag [#allocation4], %s977
          %s979 = sand.u32 %s163, 1
          %s980 = smul.addr %s979, 128
          %s981 = scalar_lea.vmem [#allocation8], %s980
          %983 = dma.done %s978, 2048
        $region60: #{tpu_custom_call.1} parent=55 // pred_fallthru
          _
      $region56: #{tpu_custom_call.1} parent=5 // pred_fallthru
        _
    $region6: #{tpu_custom_call.1} parent=1 // loop_footer
      %s23 = sadd.s32 1, %s19
    $region7: #{tpu_custom_call.1} parent=1 // loop_footer_branch
      %18 = sbr.rel target = $region3
    $region8: #{tpu_custom_call.1} parent=1 // loop_exit
      _
    %984 = vsyncpa [#allocation3], 1
    %s985 = scalar_lea.sflag [#allocation3], 1
    %986 = vsyncpa %s985, 1
    %987 = vsyncpa [#allocation6], 1
    %s988 = scalar_lea.sflag [#allocation6], 1
    %989 = vsyncpa %s988, 1
    %990 = vsyncpa [#allocation4], 1
    %s991 = scalar_lea.sflag [#allocation4], 1
    %992 = vsyncpa %s991, 1

</llo_original>
